<compile_context>
chip_gen: v7x
topology: tpu7x:2x2x1
jax: 0.10.0
libtpu: 0.0.40
codegen_flags: <defaults>
</compile_context>

<pallas_src>
import functools

import jax
import jax.numpy as jnp
import jax.scipy.linalg
from jax.experimental import pallas as pl
from jax.experimental.pallas import tpu as pltpu


def _mlp_kernel(x_ref, w1_ref, b1_ref, w2_ref, b2_ref, o_ref):
    """Fused 2-layer MLP on a (tile, fold*d) lane-folded block:
       tanh(tanh(x @ W1 + b1) @ W2 + b2)."""
    x = x_ref[...]
    h = jnp.tanh(
        jnp.dot(x, w1_ref[...], preferred_element_type=jnp.float32) + b1_ref[...]
    )
    y = jnp.tanh(
        jnp.dot(h, w2_ref[...], preferred_element_type=jnp.float32) + b2_ref[...]
    )
    o_ref[...] = y.astype(o_ref.dtype)


def _round_up(a, m):
    return ((a + m - 1) // m) * m


def _fold_params(w, b, fold):
    """Block-diagonal weight replication + lane-tiled bias (exact fold)."""
    if fold == 1:
        return w, b
    wf = jax.scipy.linalg.block_diag(*([w] * fold))
    bf = jnp.tile(b, (1, fold))
    return wf, bf


@functools.partial(jax.jit, static_argnames=("batch_tile", "lane_target"))
def mlp_forward(x, w1, b1, w2, b2, *, batch_tile=2048, lane_target=128):
    """x: (B, inChNo); w1: (inChNo, h1); b1: (1, h1); w2: (h1, h2); b2: (1, h2).

    lane_target: 128 (default, fills v5e MXU; correct everywhere) or 256 for
                 v6e/v7x where the MXU is 2x256x256.
    """
    B, d_in = x.shape
    h1 = w1.shape[1]
    h2 = w2.shape[1]
    dtype = x.dtype

    # --- lane folding factor ------------------------------------------------
    dmin = min(d_in, h1, h2)
    fold = max(1, lane_target // dmin)

    # --- pad batch so folded rows are a multiple of the (8-aligned) tile -----
    bf_rows = pl.cdiv(B, fold)                       # folded rows needed
    tile = min(batch_tile, _round_up(bf_rows, 8))    # clamp for small batches
    tile = max(8, (tile // 8) * 8)                   # keep sublane-aligned
    bf_pad = _round_up(bf_rows, tile)
    b_pad = bf_pad * fold
    if b_pad != B:
        x = jnp.pad(x, ((0, b_pad - B), (0, 0)))
    xf = x.reshape(bf_pad, fold * d_in)              # free: row-major contiguous

    # --- folded parameters ----------------------------------------------------
    w1f, b1f = _fold_params(w1, b1, fold)            # (fold*d_in, fold*h1), (1, fold*h1)
    w2f, b2f = _fold_params(w2, b2, fold)            # (fold*h1, fold*h2), (1, fold*h2)

    grid = (bf_pad // tile,)
    bytes_per_elt = jnp.dtype(dtype).itemsize
    cost = pl.CostEstimate(
        flops=2 * b_pad * (d_in * h1 + h1 * h2),
        transcendentals=b_pad * (h1 + h2),
        bytes_accessed=bytes_per_elt
        * (b_pad * d_in + b_pad * h2
           + fold * fold * (d_in * h1 + h1 * h2)
           + fold * (h1 + h2)),
    )

    out_f = pl.pallas_call(
        _mlp_kernel,
        out_shape=jax.ShapeDtypeStruct((bf_pad, fold * h2), dtype),
        grid_spec=pltpu.PrefetchScalarGridSpec(
            num_scalar_prefetch=0,
            grid=grid,
            in_specs=[
                pl.BlockSpec((tile, fold * d_in), lambda i: (i, 0)),     # x tile
                pl.BlockSpec((fold * d_in, fold * h1), lambda i: (0, 0)),  # W1 (resident)
                pl.BlockSpec((1, fold * h1), lambda i: (0, 0)),            # b1
                pl.BlockSpec((fold * h1, fold * h2), lambda i: (0, 0)),    # W2 (resident)
                pl.BlockSpec((1, fold * h2), lambda i: (0, 0)),            # b2
            ],
            out_specs=pl.BlockSpec((tile, fold * h2), lambda i: (i, 0)),
        ),
        compiler_params=pltpu.CompilerParams(
            dimension_semantics=("parallel",),
        ),
        cost_estimate=cost,
    )(xf, w1f, b1f, w2f, b2f)

    # unfold lanes back to (batch, features) and strip padding
    out = out_f.reshape(b_pad, h2)[:B]
    return out


def _torch_linear_init(key, fan_in, fan_out, dtype=jnp.float32):
    """Deterministic init matching torch.nn.Linear default U(-1/sqrt(fan_in), +1/sqrt(fan_in))."""
    kw, kb = jax.random.split(key)
    bound = 1.0 / jnp.sqrt(fan_in)
    w = jax.random.uniform(kw, (fan_in, fan_out), dtype, minval=-bound, maxval=bound)
    b = jax.random.uniform(kb, (1, fan_out), dtype, minval=-bound, maxval=bound)
    return w, b


def _reference(x, w1, b1, w2, b2):
    h = jnp.tanh(x @ w1 + b1)
    return jnp.tanh(h @ w2 + b2)


if __name__ == "__main__":
    # Small shapes consistent with the module's forward (Linear over last dim).
    # batch deliberately NOT a multiple of fold*tile to exercise the padding path.
    batch = 50
    in_ch = 32
    layer_cfg = (32, 32)

    key = jax.random.PRNGKey(0)
    kx, k1, k2 = jax.random.split(key, 3)

    x = jax.random.normal(kx, (batch, in_ch), jnp.float32)
    w1, b1 = _torch_linear_init(k1, in_ch, layer_cfg[0])
    w2, b2 = _torch_linear_init(k2, layer_cfg[0], layer_cfg[1])

    out = mlp_forward(x, w1, b1, w2, b2)            # lane_target=128 default
    out = jax.block_until_ready(out)

    ref = _reference(x, w1, b1, w2, b2)
    assert out.shape == (batch, layer_cfg[-1])
    assert jnp.allclose(out, ref, atol=1e-5, rtol=1e-5), "mismatch vs JAX reference"

    # TODO(synk): dropout / normType branches of MLP are disabled by default
    # (dropRate=None, normType=None) and are not implemented in the kernel.

    print("KERNEL_OK")
</pallas_src>

<mosaic_0001>
module attributes {stable_mosaic.version = 11 : i64} {
  func.func @_mlp_kernel(%arg0: i32, %arg1: memref<16x128xf32, #tpu.memory_space<vmem>>, %arg2: memref<128x128xf32, #tpu.memory_space<vmem>>, %arg3: memref<1x128xf32, #tpu.memory_space<vmem>>, %arg4: memref<128x128xf32, #tpu.memory_space<vmem>>, %arg5: memref<1x128xf32, #tpu.memory_space<vmem>>, %arg6: memref<16x128xf32, #tpu.memory_space<vmem>>) attributes {dimension_semantics = [#tpu.dimension_semantics<parallel>], iteration_bounds = array<i64: 1>, scalar_prefetch = 0 : i64, scratch_operands = 0 : i64, tpu.core_type = #tpu.core_type<tc>, window_params = [{transform_indices = @transform_0, window_bounds = array<i64: 16, 128>}, {pipeline_mode = #tpu.pipeline_mode<synchronous>, transform_indices = @transform_1, window_bounds = array<i64: 128, 128>}, {pipeline_mode = #tpu.pipeline_mode<synchronous>, transform_indices = @transform_2, window_bounds = array<i64: 1, 128>}, {pipeline_mode = #tpu.pipeline_mode<synchronous>, transform_indices = @transform_3, window_bounds = array<i64: 128, 128>}, {pipeline_mode = #tpu.pipeline_mode<synchronous>, transform_indices = @transform_4, window_bounds = array<i64: 1, 128>}, {transform_indices = @transform_5, window_bounds = array<i64: 16, 128>}]} {
    %c0 = arith.constant 0 : index
    %c0_0 = arith.constant 0 : index
    %0 = vector.load %arg1[%c0, %c0_0] : memref<16x128xf32, #tpu.memory_space<vmem>>, vector<16x128xf32>
    %c0_1 = arith.constant 0 : index
    %c0_2 = arith.constant 0 : index
    %1 = vector.load %arg2[%c0_1, %c0_2] : memref<128x128xf32, #tpu.memory_space<vmem>>, vector<128x128xf32>
    %cst = arith.constant dense<0.000000e+00> : vector<16x128xf32>
    %2 = tpu.matmul %0, %1, %cst {dimension_numbers = #tpu.dot_dimension_numbers<[1], [0], [0], [1], [0, 0, 1, 1], [], []>} : vector<16x128xf32>, vector<128x128xf32>, vector<16x128xf32> -> vector<16x128xf32>
    %c0_3 = arith.constant 0 : index
    %c0_4 = arith.constant 0 : index
    %3 = vector.load %arg3[%c0_3, %c0_4] : memref<1x128xf32, #tpu.memory_space<vmem>>, vector<1x128xf32>
    %4 = vector.broadcast %3 : vector<1x128xf32> to vector<16x128xf32>
    %5 = arith.addf %2, %4 : vector<16x128xf32>
    %6 = math.tanh %5 : vector<16x128xf32>
    %c0_5 = arith.constant 0 : index
    %c0_6 = arith.constant 0 : index
    %7 = vector.load %arg4[%c0_5, %c0_6] : memref<128x128xf32, #tpu.memory_space<vmem>>, vector<128x128xf32>
    %cst_7 = arith.constant dense<0.000000e+00> : vector<16x128xf32>
    %8 = tpu.matmul %6, %7, %cst_7 {dimension_numbers = #tpu.dot_dimension_numbers<[1], [0], [0], [1], [0, 0, 1, 1], [], []>} : vector<16x128xf32>, vector<128x128xf32>, vector<16x128xf32> -> vector<16x128xf32>
    %c0_8 = arith.constant 0 : index
    %c0_9 = arith.constant 0 : index
    %9 = vector.load %arg5[%c0_8, %c0_9] : memref<1x128xf32, #tpu.memory_space<vmem>>, vector<1x128xf32>
    %10 = vector.broadcast %9 : vector<1x128xf32> to vector<16x128xf32>
    %11 = arith.addf %8, %10 : vector<16x128xf32>
    %12 = math.tanh %11 : vector<16x128xf32>
    %c0_10 = arith.constant 0 : index
    %c0_11 = arith.constant 0 : index
    %13 = vector.load %arg6[%c0_10, %c0_11] : memref<16x128xf32, #tpu.memory_space<vmem>>, vector<16x128xf32>
    tpu.vector_store %arg6[%c0_10, %c0_11], %12 {strides = array<i32>} : memref<16x128xf32, #tpu.memory_space<vmem>>, vector<16x128xf32>,
    return
  }
  func.func @transform_0(%arg0: i32) -> (i32, i32) {
    %c0_i32 = arith.constant 0 : i32
    %c0_i32_0 = arith.constant 0 : i32
    return %arg0, %c0_i32 : i32, i32
  }
  func.func @transform_1(%arg0: i32) -> (i32, i32) {
    %c0_i32 = arith.constant 0 : i32
    %c0_i32_0 = arith.constant 0 : i32
    %c0_i32_1 = arith.constant 0 : i32
    return %c0_i32, %c0_i32_0 : i32, i32
  }
  func.func @transform_2(%arg0: i32) -> (i32, i32) {
    %c0_i32 = arith.constant 0 : i32
    %c0_i32_0 = arith.constant 0 : i32
    %c0_i32_1 = arith.constant 0 : i32
    return %c0_i32, %c0_i32_0 : i32, i32
  }
  func.func @transform_3(%arg0: i32) -> (i32, i32) {
    %c0_i32 = arith.constant 0 : i32
    %c0_i32_0 = arith.constant 0 : i32
    %c0_i32_1 = arith.constant 0 : i32
    return %c0_i32, %c0_i32_0 : i32, i32
  }
  func.func @transform_4(%arg0: i32) -> (i32, i32) {
    %c0_i32 = arith.constant 0 : i32
    %c0_i32_0 = arith.constant 0 : i32
    %c0_i32_1 = arith.constant 0 : i32
    return %c0_i32, %c0_i32_0 : i32, i32
  }
  func.func @transform_5(%arg0: i32) -> (i32, i32) {
    %c0_i32 = arith.constant 0 : i32
    %c0_i32_0 = arith.constant 0 : i32
    return %arg0, %c0_i32 : i32, i32
  }
}

</mosaic_0001>

<llo_original>
// kernel: mlp_forward.1
$region0: #{mlp_forward.1}
  #allocation0 [shape = 'u32[]', space=smem, size = 0x4, offset = 0x4, fixed_abs, tag = 'smem constant byte address 0x4 - core index']
  #allocation1 [shape = 'u32[144,128]{1,0:T(1,128)}', space=vmem, size = 0x12000, scoped, tag = 'internal scratch']
  %s0 = inlined_call_operand.vmem [shape: f32[16,128], index: 0, kind: input, shape index: {}]
  %s1 = inlined_call_operand.vmem [shape: f32[128,128], index: 1, kind: input, shape index: {}]
  %s2 = inlined_call_operand.vmem [shape: f32[1,128], index: 2, kind: input, shape index: {}]
  %s3 = inlined_call_operand.vmem [shape: f32[128,128], index: 3, kind: input, shape index: {}]
  %s4 = inlined_call_operand.vmem [shape: f32[1,128], index: 4, kind: input, shape index: {}]
  %s5 = inlined_call_operand.vmem [shape: f32[16,128], index: 5, kind: output, shape index: {}]
  %s6 = sld [smem:[#allocation0]]
  $region30: #{mlp_forward.1} parent=0
    _
  %s8 = ssub.s32 1, %s6
  %s9 = scalar_select 0, %s8, %s6
  // Predicated region
  $region2: #{mlp_forward.1} parent=0 // pred_check
    _
  $region3: #{mlp_forward.1} parent=0 // pred_check_branch
    %11 = sbr.rel (0) target = $region5
  $region4: #{mlp_forward.1} parent=0 // pred_region
    _
  $region5: #{mlp_forward.1} parent=0 // pred_fallthru
    _
  // Predicated region
  $region6: #{mlp_forward.1} parent=0 // pred_check
    _
  $region7: #{mlp_forward.1} parent=0 // pred_check_branch
    %13 = sbr.rel (0) target = $region9
  $region8: #{mlp_forward.1} parent=0 // pred_region
    _
  $region9: #{mlp_forward.1} parent=0 // pred_fallthru
    _
  // Predicated region
  $region10: #{mlp_forward.1} parent=0 // pred_check
    _
  $region11: #{mlp_forward.1} parent=0 // pred_check_branch
    %15 = sbr.rel (0) target = $region13
  $region12: #{mlp_forward.1} parent=0 // pred_region
    _
  $region13: #{mlp_forward.1} parent=0 // pred_fallthru
    _
  // Predicated region
  $region14: #{mlp_forward.1} parent=0 // pred_check
    _
  $region15: #{mlp_forward.1} parent=0 // pred_check_branch
    %17 = sbr.rel (0) target = $region17
  $region16: #{mlp_forward.1} parent=0 // pred_region
    _
  $region17: #{mlp_forward.1} parent=0 // pred_fallthru
    _
  // Predicated region
  $region18: #{mlp_forward.1} parent=0 // pred_check
    _
  $region19: #{mlp_forward.1} parent=0 // pred_check_branch
    %19 = sbr.rel (0) target = $region21
  $region20: #{mlp_forward.1} parent=0 // pred_region
    _
  $region21: #{mlp_forward.1} parent=0 // pred_fallthru
    _
  %v20 = vld [vmem:[%s0] sm:$0xff]
  %v21 = vld [vmem:[%s0 + $0x8] sm:$0xff]
  %v22 = vld [vmem:[%s1] sm:$0xff]
  %v23 = vld [vmem:[%s1 + $0x8] sm:$0xff]
  %v24 = vld [vmem:[%s1 + $0x10] sm:$0xff]
  %v25 = vld [vmem:[%s1 + $0x18] sm:$0xff]
  %v26 = vld [vmem:[%s1 + $0x20] sm:$0xff]
  %v27 = vld [vmem:[%s1 + $0x28] sm:$0xff]
  %v28 = vld [vmem:[%s1 + $0x30] sm:$0xff]
  %v29 = vld [vmem:[%s1 + $0x38] sm:$0xff]
  %v30 = vld [vmem:[%s1 + $0x40] sm:$0xff]
  %v31 = vld [vmem:[%s1 + $0x48] sm:$0xff]
  %v32 = vld [vmem:[%s1 + $0x50] sm:$0xff]
  %v33 = vld [vmem:[%s1 + $0x58] sm:$0xff]
  %v34 = vld [vmem:[%s1 + $0x60] sm:$0xff]
  %v35 = vld [vmem:[%s1 + $0x68] sm:$0xff]
  %v36 = vld [vmem:[%s1 + $0x70] sm:$0xff]
  %v37 = vld [vmem:[%s1 + $0x78] sm:$0xff]
  %v38 = vld [vmem:[%s2] sm:$0x1]
  %v40 = vlaneseq
  %v41 = vshrl.u32 %v40, 7
  %v42 = vsub.s32 0, %v41
  %v43 = vrot.slane %v38, %v42
  %45 = vmatprep.subr.mxu0 0.0
  %46 = vmatpush1.msra.mxu0 %v22
  %47 = vmatprep.subr.mxu0 0.0
  %48 = vmatpush1.msra.mxu0 %v23
  %49 = vmatprep.subr.mxu0 0.0
  %50 = vmatpush1.msra.mxu0 %v24
  %51 = vmatprep.subr.mxu0 0.0
  %52 = vmatpush1.msra.mxu0 %v25
  %53 = vmatprep.subr.mxu0 0.0
  %54 = vmatpush1.msra.mxu0 %v26
  %55 = vmatprep.subr.mxu0 0.0
  %56 = vmatpush1.msra.mxu0 %v27
  %57 = vmatprep.subr.mxu0 0.0
  %58 = vmatpush1.msra.mxu0 %v28
  %59 = vmatprep.subr.mxu0 0.0
  %60 = vmatpush1.msra.mxu0 %v29
  %61 = vmatprep.subr.mxu0 0.0
  %62 = vmatpush1.msra.mxu0 %v30
  %63 = vmatprep.subr.mxu0 0.0
  %64 = vmatpush1.msra.mxu0 %v31
  %65 = vmatprep.subr.mxu0 0.0
  %66 = vmatpush1.msra.mxu0 %v32
  %67 = vmatprep.subr.mxu0 0.0
  %68 = vmatpush1.msra.mxu0 %v33
  %69 = vmatprep.subr.mxu0 0.0
  %70 = vmatpush1.msra.mxu0 %v34
  %71 = vmatprep.subr.mxu0 0.0
  %72 = vmatpush1.msra.mxu0 %v35
  %73 = vmatprep.subr.mxu0 0.0
  %74 = vmatpush1.msra.mxu0 %v36
  %75 = vmatprep.subr.mxu0 0.0
  %76 = vmatpush1.msra.mxu0 %v37
  %77 = vmatprep.subr.mxu0 0.0
  %78 = vmatpush1.msra.mxu0 0.0
  %79 = vmatprep.subr.mxu0 0.0
  %80 = vmatpush1.msra.mxu0 0.0
  %81 = vmatprep.subr.mxu0 0.0
  %82 = vmatpush1.msra.mxu0 0.0
  %83 = vmatprep.subr.mxu0 0.0
  %84 = vmatpush1.msra.mxu0 0.0
  %85 = vmatprep.subr.mxu0 0.0
  %86 = vmatpush1.msra.mxu0 0.0
  %87 = vmatprep.subr.mxu0 0.0
  %88 = vmatpush1.msra.mxu0 0.0
  %89 = vmatprep.subr.mxu0 0.0
  %90 = vmatpush1.msra.mxu0 0.0
  %91 = vmatprep.subr.mxu0 0.0
  %92 = vmatpush1.msra.mxu0 0.0
  %93 = vmatprep.subr.mxu0 0.0
  %94 = vmatpush1.msra.mxu0 0.0
  %95 = vmatprep.subr.mxu0 0.0
  %96 = vmatpush1.msra.mxu0 0.0
  %97 = vmatprep.subr.mxu0 0.0
  %98 = vmatpush1.msra.mxu0 0.0
  %99 = vmatprep.subr.mxu0 0.0
  %100 = vmatpush1.msra.mxu0 0.0
  %101 = vmatprep.subr.mxu0 0.0
  %102 = vmatpush1.msra.mxu0 0.0
  %103 = vmatprep.subr.mxu0 0.0
  %104 = vmatpush1.msra.mxu0 0.0
  %105 = vmatprep.subr.mxu0 0.0
  %106 = vmatpush1.msra.mxu0 0.0
  %107 = vmatprep.subr.mxu0 0.0
  %108 = vmatpush1.msra.mxu0 0.0
  %109 = vmatprep.mubr.f32.mxu0 0.0
  %110 = vmatmul.mubr.f32.gmra.mrb[0].mxu0 %v20
  %v111 = vpop.f32.mrb[0].mxu0
  %v112 = vadd.f32 %v43, %v111
  %v113 = vpop.f32.mrb[0].mxu0
  %114 = vmatprep.mubr.f32.mxu0 0.0
  %115 = vmatmul.mubr.f32.gmra.mrb[0].mxu0 %v21
  %v116 = vpop.f32.mrb[0].mxu0
  %v117 = vadd.f32 %v43, %v116
  %v118 = vpop.f32.mrb[0].mxu0
  %119 = vdwg.mxu0
  %v120 = vtanh.pop %v112
  %v121 = vtanh.pop %v117
  %v122 = vld [vmem:[%s3] sm:$0xff]
  %v123 = vld [vmem:[%s3 + $0x8] sm:$0xff]
  %v124 = vld [vmem:[%s3 + $0x10] sm:$0xff]
  %v125 = vld [vmem:[%s3 + $0x18] sm:$0xff]
  %v126 = vld [vmem:[%s3 + $0x20] sm:$0xff]
  %v127 = vld [vmem:[%s3 + $0x28] sm:$0xff]
  %v128 = vld [vmem:[%s3 + $0x30] sm:$0xff]
  %v129 = vld [vmem:[%s3 + $0x38] sm:$0xff]
  %v130 = vld [vmem:[%s3 + $0x40] sm:$0xff]
  %v131 = vld [vmem:[%s3 + $0x48] sm:$0xff]
  %v132 = vld [vmem:[%s3 + $0x50] sm:$0xff]
  %v133 = vld [vmem:[%s3 + $0x58] sm:$0xff]
  %v134 = vld [vmem:[%s3 + $0x60] sm:$0xff]
  %v135 = vld [vmem:[%s3 + $0x68] sm:$0xff]
  %v136 = vld [vmem:[%s3 + $0x70] sm:$0xff]
  %v137 = vld [vmem:[%s3 + $0x78] sm:$0xff]
  %v138 = vld [vmem:[%s4] sm:$0x1]
  %v140 = vlaneseq
  %v141 = vshrl.u32 %v140, 7
  %v142 = vsub.s32 0, %v141
  %v143 = vrot.slane %v138, %v142
  %145 = vmatprep.subr.mxu0 0.0
  %146 = vmatpush1.msra.mxu0 %v122
  %147 = vmatprep.subr.mxu0 0.0
  %148 = vmatpush1.msra.mxu0 %v123
  %149 = vmatprep.subr.mxu0 0.0
  %150 = vmatpush1.msra.mxu0 %v124
  %151 = vmatprep.subr.mxu0 0.0
  %152 = vmatpush1.msra.mxu0 %v125
  %153 = vmatprep.subr.mxu0 0.0
  %154 = vmatpush1.msra.mxu0 %v126
  %155 = vmatprep.subr.mxu0 0.0
  %156 = vmatpush1.msra.mxu0 %v127
  %157 = vmatprep.subr.mxu0 0.0
  %158 = vmatpush1.msra.mxu0 %v128
  %159 = vmatprep.subr.mxu0 0.0
  %160 = vmatpush1.msra.mxu0 %v129
  %161 = vmatprep.subr.mxu0 0.0
  %162 = vmatpush1.msra.mxu0 %v130
  %163 = vmatprep.subr.mxu0 0.0
  %164 = vmatpush1.msra.mxu0 %v131
  %165 = vmatprep.subr.mxu0 0.0
  %166 = vmatpush1.msra.mxu0 %v132
  %167 = vmatprep.subr.mxu0 0.0
  %168 = vmatpush1.msra.mxu0 %v133
  %169 = vmatprep.subr.mxu0 0.0
  %170 = vmatpush1.msra.mxu0 %v134
  %171 = vmatprep.subr.mxu0 0.0
  %172 = vmatpush1.msra.mxu0 %v135
  %173 = vmatprep.subr.mxu0 0.0
  %174 = vmatpush1.msra.mxu0 %v136
  %175 = vmatprep.subr.mxu0 0.0
  %176 = vmatpush1.msra.mxu0 %v137
  %177 = vmatprep.subr.mxu0 0.0
  %178 = vmatpush1.msra.mxu0 0.0
  %179 = vmatprep.subr.mxu0 0.0
  %180 = vmatpush1.msra.mxu0 0.0
  %181 = vmatprep.subr.mxu0 0.0
  %182 = vmatpush1.msra.mxu0 0.0
  %183 = vmatprep.subr.mxu0 0.0
  %184 = vmatpush1.msra.mxu0 0.0
  %185 = vmatprep.subr.mxu0 0.0
  %186 = vmatpush1.msra.mxu0 0.0
  %187 = vmatprep.subr.mxu0 0.0
  %188 = vmatpush1.msra.mxu0 0.0
  %189 = vmatprep.subr.mxu0 0.0
  %190 = vmatpush1.msra.mxu0 0.0
  %191 = vmatprep.subr.mxu0 0.0
  %192 = vmatpush1.msra.mxu0 0.0
  %193 = vmatprep.subr.mxu0 0.0
  %194 = vmatpush1.msra.mxu0 0.0
  %195 = vmatprep.subr.mxu0 0.0
  %196 = vmatpush1.msra.mxu0 0.0
  %197 = vmatprep.subr.mxu0 0.0
  %198 = vmatpush1.msra.mxu0 0.0
  %199 = vmatprep.subr.mxu0 0.0
  %200 = vmatpush1.msra.mxu0 0.0
  %201 = vmatprep.subr.mxu0 0.0
  %202 = vmatpush1.msra.mxu0 0.0
  %203 = vmatprep.subr.mxu0 0.0
  %204 = vmatpush1.msra.mxu0 0.0
  %205 = vmatprep.subr.mxu0 0.0
  %206 = vmatpush1.msra.mxu0 0.0
  %207 = vmatprep.subr.mxu0 0.0
  %208 = vmatpush1.msra.mxu0 0.0
  %209 = vmatprep.mubr.f32.mxu0 0.0
  %210 = vmatmul.mubr.f32.gmra.mrb[0].mxu0 %v120
  %v211 = vpop.f32.mrb[0].mxu0
  %v212 = vadd.f32 %v143, %v211
  %v213 = vpop.f32.mrb[0].mxu0
  %214 = vmatprep.mubr.f32.mxu0 0.0
  %215 = vmatmul.mubr.f32.gmra.mrb[0].mxu0 %v121
  %v216 = vpop.f32.mrb[0].mxu0
  %v217 = vadd.f32 %v143, %v216
  %v218 = vpop.f32.mrb[0].mxu0
  %219 = vdwg.mxu0
  %v220 = vtanh.pop %v212
  %v221 = vtanh.pop %v217
  %222 = vst [vmem:[%s5] sm:$0xff] %v220
  %223 = vst [vmem:[%s5 + $0x8] sm:$0xff] %v221
  // Predicated region
  $region22: #{mlp_forward.1} parent=0 // pred_check
    _
  $region23: #{mlp_forward.1} parent=0 // pred_check_branch
    %225 = sbr.rel (0) target = $region25
  $region24: #{mlp_forward.1} parent=0 // pred_region
    _
  $region25: #{mlp_forward.1} parent=0 // pred_fallthru
    _
  // Predicated region
  $region26: #{mlp_forward.1} parent=0 // pred_check
    _
  $region27: #{mlp_forward.1} parent=0 // pred_check_branch
    %227 = sbr.rel (0) target = $region29
  $region28: #{mlp_forward.1} parent=0 // pred_region
    _
  $region29: #{mlp_forward.1} parent=0 // pred_fallthru
    _

</llo_original>
